<compile_context>
chip_gen: v7x
topology: tpu7x:2x2x1
jax: 0.10.0
libtpu: 0.0.40
codegen_flags: <defaults>
</compile_context>

<pallas_src>
import jax
import jax.numpy as jnp
from jax import lax
from jax.experimental import pallas as pl
from jax.experimental.pallas import tpu as pltpu


def _round_up(n: int, m: int) -> int:
    return ((n + m - 1) // m) * m


def _critic_kernel(x_ref, w1t_ref, b1_ref, w2t_ref, b2_ref, w3_ref, b3_ref, out_ref):
    x = x_ref[...]                                                # [TM, S] f32

    # fc1 + ReLU: h1[h, t] = sum_s w1t[h, s] * x[t, s]   (A @ B^T form; the x-tile
    # "transpose" is handled inside the dot lowering -> intermediates are [H, TM]).
    h1 = lax.dot_general(
        w1t_ref[...], x, (((1,), (1,)), ((), ())),
        preferred_element_type=jnp.float32,
        precision=lax.Precision.HIGHEST)                          # [H, TM]
    h1 = jnp.maximum(h1 + b1_ref[...], 0.0)                       # bias col broadcast

    # fc2 + ReLU: plain [H,H] @ [H,TM] matmul.
    h2 = lax.dot_general(
        w2t_ref[...], h1, (((1,), (0,)), ((), ())),
        preferred_element_type=jnp.float32,
        precision=lax.Precision.HIGHEST)                          # [H, TM]
    h2 = jnp.maximum(h2 + b2_ref[...], 0.0)

    # fc3 (out_features = 1): VPU multiply + sublane reduction (XLU slot, has slack).
    # Result is already a lane-dense [1, TM] row -> unmasked stores.
    q = jnp.sum(h2 * w3_ref[...], axis=0, keepdims=True) + b3_ref[...]   # [1, TM]
    out_ref[...] = q.astype(out_ref.dtype)


def bandwidth_critic_forward(critic_input, params, *, tm=4096):
    """critic_input: [batch, state_dim] f32.
    params: w1[S,H], b1[1,H], w2[H,H], b2[1,H], w3[H,1], b3[1,1]  (all f32)."""
    batch, state_dim = critic_input.shape
    hidden_dim = params["w1"].shape[1]

    # Batch tile: large (amortize per-grid-step overhead), but capped so the grid has
    # >= 2 steps whenever possible so v7x's two TensorCores both get work.
    tm_v7x_cap = max(8, _round_up(pl.cdiv(batch, 2), 8))
    tm = min(tm, tm_v7x_cap, _round_up(batch, 8))
    if tm >= batch:
        tm = batch                      # single full-array block (block dim == array dim)
    grid_n = pl.cdiv(batch, tm)

    # Tiny one-off parameter re-layouts: transposed weights so intermediates are
    # [H, TM]; biases as [H, 1] columns (lane-broadcast in-kernel).
    w1t = params["w1"].T                          # [H, S]
    w2t = params["w2"].T                          # [H, H]
    b1c = params["b1"].reshape(hidden_dim, 1)     # [H, 1]
    b2c = params["b2"].reshape(hidden_dim, 1)     # [H, 1]
    w3c = params["w3"].reshape(hidden_dim, 1)     # [H, 1]
    b3c = params["b3"].reshape(1, 1)              # [1, 1]

    # Parameters: same block every grid step -> DMA'd once, stay VMEM-resident.
    resident = lambda a: pl.BlockSpec(a.shape, lambda i: (0, 0))

    out = pl.pallas_call(
        _critic_kernel,
        out_shape=jax.ShapeDtypeStruct((grid_n, 1, tm), jnp.float32),
        grid=(grid_n,),
        in_specs=[
            pl.BlockSpec((tm, state_dim), lambda i: (i, 0)),   # x: tiled over batch
            resident(w1t), resident(b1c),
            resident(w2t), resident(b2c),
            resident(w3c), resident(b3c),
        ],
        # Lane-dense output: one unmasked [1, TM] row per tile.
        out_specs=pl.BlockSpec((None, 1, tm), lambda i: (i, 0, 0)),
        compiler_params=pltpu.CompilerParams(
            # v7x: batch tiles sharded across both TensorCores; no-op on v5e/v6e.
            dimension_semantics=("parallel",),
        ),
        # VMEM/step ~ 2*tm*S*4B (double-buffered x) + ~2*tm*H*4B temporaries + a few
        # KB of weights: < 2 MiB at tm=4096, well under all default scoped limits.
    )(critic_input, w1t, b1c, w2t, b2c, w3c, b3c)

    # Un-pad / re-layout: (grid_n, 1, tm) lane-dense slab -> (batch, 1) column.
    return out.reshape(grid_n * tm)[:batch].reshape(batch, 1)


def init_params(key, state_dim, hidden_dim):
    """Deterministic init mirroring nn.Linear's U(-1/sqrt(fan_in), 1/sqrt(fan_in))."""
    ks = jax.random.split(key, 6)

    def lin(kw, kb, fan_in, fan_out):
        bound = 1.0 / jnp.sqrt(jnp.float32(fan_in))
        w = jax.random.uniform(kw, (fan_in, fan_out), jnp.float32, -bound, bound)
        b = jax.random.uniform(kb, (1, fan_out), jnp.float32, -bound, bound)
        return w, b

    w1, b1 = lin(ks[0], ks[1], state_dim, hidden_dim)
    w2, b2 = lin(ks[2], ks[3], hidden_dim, hidden_dim)
    w3, b3 = lin(ks[4], ks[5], hidden_dim, 1)
    return dict(w1=w1, b1=b1, w2=w2, b2=b2, w3=w3, b3=b3)


def reference_forward(x, p):
    """Full-f32 reference (HIGHEST precision so the XLA matmuls don't downcast)."""
    hp = lax.Precision.HIGHEST
    h1 = jnp.maximum(jnp.dot(x, p["w1"], precision=hp) + p["b1"], 0.0)
    h2 = jnp.maximum(jnp.dot(h1, p["w2"], precision=hp) + p["b2"], 0.0)
    return jnp.dot(h2, p["w3"], precision=hp) + p["b3"]


if __name__ == "__main__":
    state_dim, hidden_dim = 16, 32

    key = jax.random.PRNGKey(0)
    k_x, k_p, k_x2 = jax.random.split(key, 3)
    params = init_params(k_p, state_dim, hidden_dim)

    # Small case (single full-array block, grid=(1,)).
    batch = 8
    x = jax.random.normal(k_x, (batch, state_dim), jnp.float32)
    q = jax.block_until_ready(bandwidth_critic_forward(x, params))
    assert q.shape == (batch, 1)
    assert jnp.allclose(q, reference_forward(x, params), atol=1e-4, rtol=1e-4), \
        "mismatch vs f32 reference (small batch)"

    # Ragged batch exercising the grid: batch=1000 -> 2 tiles of tm=504, last partial.
    batch2 = 1000
    x2 = jax.random.normal(k_x2, (batch2, state_dim), jnp.float32)
    q2 = jax.block_until_ready(bandwidth_critic_forward(x2, params))
    assert q2.shape == (batch2, 1)
    assert jnp.allclose(q2, reference_forward(x2, params), atol=1e-4, rtol=1e-4), \
        "mismatch vs f32 reference (ragged tiled batch)"

    print("KERNEL_OK")
</pallas_src>

<mosaic_0001>
module attributes {stable_mosaic.version = 11 : i64} {
  func.func @_critic_kernel(%arg0: i32, %arg1: memref<8x16xf32, #tpu.memory_space<vmem>>, %arg2: memref<32x16xf32, #tpu.memory_space<vmem>>, %arg3: memref<32x1xf32, #tpu.memory_space<vmem>>, %arg4: memref<32x32xf32, #tpu.memory_space<vmem>>, %arg5: memref<32x1xf32, #tpu.memory_space<vmem>>, %arg6: memref<32x1xf32, #tpu.memory_space<vmem>>, %arg7: memref<1x1xf32, #tpu.memory_space<vmem>>, %arg8: memref<1x1x8xf32, #tpu.memory_space<vmem>>) attributes {dimension_semantics = [#tpu.dimension_semantics<parallel>], iteration_bounds = array<i64: 1>, scalar_prefetch = 0 : i64, scratch_operands = 0 : i64, tpu.core_type = #tpu.core_type<tc>, window_params = [{transform_indices = @transform_0, window_bounds = array<i64: 8, 16>}, {pipeline_mode = #tpu.pipeline_mode<synchronous>, transform_indices = @transform_1, window_bounds = array<i64: 32, 16>}, {pipeline_mode = #tpu.pipeline_mode<synchronous>, transform_indices = @transform_2, window_bounds = array<i64: 32, 1>}, {pipeline_mode = #tpu.pipeline_mode<synchronous>, transform_indices = @transform_3, window_bounds = array<i64: 32, 32>}, {pipeline_mode = #tpu.pipeline_mode<synchronous>, transform_indices = @transform_4, window_bounds = array<i64: 32, 1>}, {pipeline_mode = #tpu.pipeline_mode<synchronous>, transform_indices = @transform_5, window_bounds = array<i64: 32, 1>}, {pipeline_mode = #tpu.pipeline_mode<synchronous>, transform_indices = @transform_6, window_bounds = array<i64: 1, 1>}, {transform_indices = @transform_7, window_bounds = array<i64: 1, 1, 8>}]} {
    %c0 = arith.constant 0 : index
    %c0_0 = arith.constant 0 : index
    %0 = vector.load %arg1[%c0, %c0_0] : memref<8x16xf32, #tpu.memory_space<vmem>>, vector<8x16xf32>
    %c0_1 = arith.constant 0 : index
    %c0_2 = arith.constant 0 : index
    %1 = vector.load %arg2[%c0_1, %c0_2] : memref<32x16xf32, #tpu.memory_space<vmem>>, vector<32x16xf32>
    %cst = arith.constant dense<0.000000e+00> : vector<32x8xf32>
    %2 = tpu.matmul %1, %0, %cst {dimension_numbers = #tpu.dot_dimension_numbers<[1], [1], [0], [0], [0, 0, 1, 0], [], []>, precision = #tpu.contract_precision<fp32>} : vector<32x16xf32>, vector<8x16xf32>, vector<32x8xf32> -> vector<32x8xf32>
    %c0_3 = arith.constant 0 : index
    %c0_4 = arith.constant 0 : index
    %3 = vector.load %arg3[%c0_3, %c0_4] : memref<32x1xf32, #tpu.memory_space<vmem>>, vector<32x1xf32>
    %4 = vector.broadcast %3 : vector<32x1xf32> to vector<32x8xf32>
    %5 = arith.addf %2, %4 : vector<32x8xf32>
    %cst_5 = arith.constant 0.000000e+00 : f32
    %6 = vector.broadcast %cst_5 : f32 to vector<32x8xf32>
    %7 = arith.maximumf %5, %6 : vector<32x8xf32>
    %c0_6 = arith.constant 0 : index
    %c0_7 = arith.constant 0 : index
    %8 = vector.load %arg4[%c0_6, %c0_7] : memref<32x32xf32, #tpu.memory_space<vmem>>, vector<32x32xf32>
    %cst_8 = arith.constant dense<0.000000e+00> : vector<32x8xf32>
    %9 = tpu.matmul %8, %7, %cst_8 {dimension_numbers = #tpu.dot_dimension_numbers<[1], [0], [0], [1], [0, 0, 1, 1], [], []>, precision = #tpu.contract_precision<fp32>} : vector<32x32xf32>, vector<32x8xf32>, vector<32x8xf32> -> vector<32x8xf32>
    %c0_9 = arith.constant 0 : index
    %c0_10 = arith.constant 0 : index
    %10 = vector.load %arg5[%c0_9, %c0_10] : memref<32x1xf32, #tpu.memory_space<vmem>>, vector<32x1xf32>
    %11 = vector.broadcast %10 : vector<32x1xf32> to vector<32x8xf32>
    %12 = arith.addf %9, %11 : vector<32x8xf32>
    %cst_11 = arith.constant 0.000000e+00 : f32
    %13 = vector.broadcast %cst_11 : f32 to vector<32x8xf32>
    %14 = arith.maximumf %12, %13 : vector<32x8xf32>
    %c0_12 = arith.constant 0 : index
    %c0_13 = arith.constant 0 : index
    %15 = vector.load %arg6[%c0_12, %c0_13] : memref<32x1xf32, #tpu.memory_space<vmem>>, vector<32x1xf32>
    %16 = vector.broadcast %15 : vector<32x1xf32> to vector<32x8xf32>
    %17 = arith.mulf %14, %16 : vector<32x8xf32>
    %cst_14 = arith.constant dense<0.000000e+00> : vector<8xf32>
    %18 = vector.multi_reduction <add>, %17, %cst_14 [0] : vector<32x8xf32> to vector<8xf32>
    %19 = vector.shape_cast %18 : vector<8xf32> to vector<1x8xf32>
    %c0_15 = arith.constant 0 : index
    %c0_16 = arith.constant 0 : index
    %20 = vector.load %arg7[%c0_15, %c0_16] : memref<1x1xf32, #tpu.memory_space<vmem>>, vector<1x1xf32>
    %21 = vector.broadcast %20 : vector<1x1xf32> to vector<1x8xf32>
    %22 = arith.addf %19, %21 : vector<1x8xf32>
    %c0_17 = arith.constant 0 : index
    %c0_18 = arith.constant 0 : index
    %c0_19 = arith.constant 0 : index
    %23 = vector.load %arg8[%c0_17, %c0_18, %c0_19] : memref<1x1x8xf32, #tpu.memory_space<vmem>>, vector<1x1x8xf32>
    %24 = vector.shape_cast %23 : vector<1x1x8xf32> to vector<1x8xf32>
    %25 = vector.shape_cast %22 : vector<1x8xf32> to vector<1x1x8xf32>
    tpu.vector_store %arg8[%c0_17, %c0_18, %c0_19], %25 {strides = array<i32>} : memref<1x1x8xf32, #tpu.memory_space<vmem>>, vector<1x1x8xf32>,
    return
  }
  func.func @transform_0(%arg0: i32) -> (i32, i32) {
    %c0_i32 = arith.constant 0 : i32
    %c0_i32_0 = arith.constant 0 : i32
    return %arg0, %c0_i32 : i32, i32
  }
  func.func @transform_1(%arg0: i32) -> (i32, i32) {
    %c0_i32 = arith.constant 0 : i32
    %c0_i32_0 = arith.constant 0 : i32
    %c0_i32_1 = arith.constant 0 : i32
    return %c0_i32, %c0_i32_0 : i32, i32
  }
  func.func @transform_2(%arg0: i32) -> (i32, i32) {
    %c0_i32 = arith.constant 0 : i32
    %c0_i32_0 = arith.constant 0 : i32
    %c0_i32_1 = arith.constant 0 : i32
    return %c0_i32, %c0_i32_0 : i32, i32
  }
  func.func @transform_3(%arg0: i32) -> (i32, i32) {
    %c0_i32 = arith.constant 0 : i32
    %c0_i32_0 = arith.constant 0 : i32
    %c0_i32_1 = arith.constant 0 : i32
    return %c0_i32, %c0_i32_0 : i32, i32
  }
  func.func @transform_4(%arg0: i32) -> (i32, i32) {
    %c0_i32 = arith.constant 0 : i32
    %c0_i32_0 = arith.constant 0 : i32
    %c0_i32_1 = arith.constant 0 : i32
    return %c0_i32, %c0_i32_0 : i32, i32
  }
  func.func @transform_5(%arg0: i32) -> (i32, i32) {
    %c0_i32 = arith.constant 0 : i32
    %c0_i32_0 = arith.constant 0 : i32
    %c0_i32_1 = arith.constant 0 : i32
    return %c0_i32, %c0_i32_0 : i32, i32
  }
  func.func @transform_6(%arg0: i32) -> (i32, i32) {
    %c0_i32 = arith.constant 0 : i32
    %c0_i32_0 = arith.constant 0 : i32
    %c0_i32_1 = arith.constant 0 : i32
    return %c0_i32, %c0_i32_0 : i32, i32
  }
  func.func @transform_7(%arg0: i32) -> (i32, i32, i32) {
    %c0_i32 = arith.constant 0 : i32
    %c0_i32_0 = arith.constant 0 : i32
    %c0_i32_1 = arith.constant 0 : i32
    return %arg0, %c0_i32, %c0_i32_0 : i32, i32, i32
  }
}

</mosaic_0001>

<llo_original>
// kernel: tpu_custom_call.1
$region0: #{tpu_custom_call.1}
  #allocation0 [shape = 'u32[]', space=smem, size = 0x4, offset = 0x4, fixed_abs, tag = 'smem constant byte address 0x4 - core index']
  #allocation1 [shape = 'u32[144,128]{1,0:T(1,128)}', space=vmem, size = 0x12000, scoped, tag = 'internal scratch']
  #allocation2 [shape = 'f32[1,1]{1,0:T(1,128)S(1)}', space=vmem, size = 0x200, scoped, tag = 'scoped memory for tpu_custom_call.1']
  %s0 = inlined_call_operand.vmem [shape: f32[8,16], index: 0, kind: input, shape index: {}]
  %s1 = inlined_call_operand.vmem [shape: f32[32,16], index: 1, kind: input, shape index: {}]
  %s2 = inlined_call_operand.vmem [shape: f32[32,1], index: 2, kind: input, shape index: {}]
  %s3 = inlined_call_operand.vmem [shape: f32[32,32], index: 3, kind: input, shape index: {}]
  %s4 = inlined_call_operand.vmem [shape: f32[32,1], index: 4, kind: input, shape index: {}]
  %s5 = inlined_call_operand.vmem [shape: f32[32,1], index: 5, kind: input, shape index: {}]
  %s6 = inlined_call_operand.<no memory space> [shape: f32[1,1], index: 6, kind: input, shape index: {}]
  %s7 = inlined_call_operand.hbm [shape: f32[1,1,8], index: 7, kind: output, shape index: {}]
  %s8 = sld [smem:[#allocation0]]
  $region38: #{tpu_custom_call.1} parent=0
    _
  %s10 = ssub.s32 1, %s8
  %s11 = scalar_select 0, %s10, %s8
  %v12 = vstv %s6
  %13 = vst [vmem:[#allocation2] sm:$0x1] %v12
  $region1: #{tpu_custom_call.1} parent=0
    #allocation3 [shape = 'u8[512]{0}', space=vmem, size = 0x400, scoped, tag = 'output window, operand 0, single buffered']
    #allocation4 [shape = 's32[1]{0}', space=sflag, size = 0x4, scoped, tag = 'scoped memory for tpu_custom_call.1']
    %14 = vsyncpa [#allocation4], 0
    // Predicated region
    $region2: #{tpu_custom_call.1} parent=1 // pred_check
      _
    $region3: #{tpu_custom_call.1} parent=1 // pred_check_branch
      %16 = sbr.rel (0) target = $region5
    $region4: #{tpu_custom_call.1} parent=1 // pred_region
      _
    $region5: #{tpu_custom_call.1} parent=1 // pred_fallthru
      _
    // Predicated region
    $region6: #{tpu_custom_call.1} parent=1 // pred_check
      _
    $region7: #{tpu_custom_call.1} parent=1 // pred_check_branch
      %18 = sbr.rel (0) target = $region9
    $region8: #{tpu_custom_call.1} parent=1 // pred_region
      _
    $region9: #{tpu_custom_call.1} parent=1 // pred_fallthru
      _
    // Predicated region
    $region10: #{tpu_custom_call.1} parent=1 // pred_check
      _
    $region11: #{tpu_custom_call.1} parent=1 // pred_check_branch
      %20 = sbr.rel (0) target = $region13
    $region12: #{tpu_custom_call.1} parent=1 // pred_region
      _
    $region13: #{tpu_custom_call.1} parent=1 // pred_fallthru
      _
    // Predicated region
    $region14: #{tpu_custom_call.1} parent=1 // pred_check
      _
    $region15: #{tpu_custom_call.1} parent=1 // pred_check_branch
      %22 = sbr.rel (0) target = $region17
    $region16: #{tpu_custom_call.1} parent=1 // pred_region
      _
    $region17: #{tpu_custom_call.1} parent=1 // pred_fallthru
      _
    // Predicated region
    $region18: #{tpu_custom_call.1} parent=1 // pred_check
      _
    $region19: #{tpu_custom_call.1} parent=1 // pred_check_branch
      %24 = sbr.rel (0) target = $region21
    $region20: #{tpu_custom_call.1} parent=1 // pred_region
      _
    $region21: #{tpu_custom_call.1} parent=1 // pred_fallthru
      _
    // Predicated region
    $region22: #{tpu_custom_call.1} parent=1 // pred_check
      _
    $region23: #{tpu_custom_call.1} parent=1 // pred_check_branch
      %26 = sbr.rel (0) target = $region25
    $region24: #{tpu_custom_call.1} parent=1 // pred_region
      _
    $region25: #{tpu_custom_call.1} parent=1 // pred_fallthru
      _
    // Predicated region
    $region26: #{tpu_custom_call.1} parent=1 // pred_check
      _
    $region27: #{tpu_custom_call.1} parent=1 // pred_check_branch
      %28 = sbr.rel (0) target = $region29
    $region28: #{tpu_custom_call.1} parent=1 // pred_region
      _
    $region29: #{tpu_custom_call.1} parent=1 // pred_fallthru
      _
    %v29 = vld [vmem:[%s0] sm:$0xff]
    %v30 = vld [vmem:[%s1] sm:$0xff]
    %v31 = vld [vmem:[%s1 + $0x8] sm:$0xff]
    %v32 = vld [vmem:[%s1 + $0x10] sm:$0xff]
    %v33 = vld [vmem:[%s1 + $0x18] sm:$0xff]
    %v34 = vld [vmem:[%s2] sm:$0xff]
    %v35 = vld [vmem:[%s2 + $0x8] sm:$0xff]
    %v36 = vld [vmem:[%s2 + $0x10] sm:$0xff]
    %v37 = vld [vmem:[%s2 + $0x18] sm:$0xff]
    %39 = vset.pattern.permute.xlu0 0
    %40 = vperm.xlu0 %39, %v34
    %v41 = vpop.permute.xlu0 %40
    %44 = vset.pattern.permute.xlu0 0
    %45 = vperm.xlu0 %44, %v35
    %v46 = vpop.permute.xlu0 %45
    %49 = vset.pattern.permute.xlu0 0
    %50 = vperm.xlu0 %49, %v36
    %v51 = vpop.permute.xlu0 %50
    %54 = vset.pattern.permute.xlu0 0
    %55 = vperm.xlu0 %54, %v37
    %v56 = vpop.permute.xlu0 %55
    %vm58 = vcmask 130048
    %v60 = vsel %vm58, %v30, 0
    %v63 = vsel %vm58, %v31, 0
    %v66 = vsel %vm58, %v32, 0
    %v69 = vsel %vm58, %v33, 0
    %v72 = vsel %vm58, %v29, 0
    %74 = vmatprep.subr.mxu0 0.0
    %v75 = vand.u32 %v72, 4294901760
    %76 = vmatpush1.xpose.msra.mxu0 %v75
    %77 = vmatprep.subr.mxu0 0.0
    %78 = vmatpush1.xpose.msra.mxu0 0.0
    %79 = vmatprep.subr.mxu0 0.0
    %80 = vmatpush1.xpose.msra.mxu0 0.0
    %81 = vmatprep.subr.mxu0 0.0
    %82 = vmatpush1.xpose.msra.mxu0 0.0
    %83 = vmatprep.subr.mxu0 0.0
    %84 = vmatpush1.xpose.msra.mxu0 0.0
    %85 = vmatprep.subr.mxu0 0.0
    %86 = vmatpush1.xpose.msra.mxu0 0.0
    %87 = vmatprep.subr.mxu0 0.0
    %88 = vmatpush1.xpose.msra.mxu0 0.0
    %89 = vmatprep.subr.mxu0 0.0
    %90 = vmatpush1.xpose.msra.mxu0 0.0
    %91 = vmatprep.subr.mxu0 0.0
    %92 = vmatpush1.xpose.msra.mxu0 0.0
    %93 = vmatprep.subr.mxu0 0.0
    %94 = vmatpush1.xpose.msra.mxu0 0.0
    %95 = vmatprep.subr.mxu0 0.0
    %96 = vmatpush1.xpose.msra.mxu0 0.0
    %97 = vmatprep.subr.mxu0 0.0
    %98 = vmatpush1.xpose.msra.mxu0 0.0
    %99 = vmatprep.subr.mxu0 0.0
    %100 = vmatpush1.xpose.msra.mxu0 0.0
    %101 = vmatprep.subr.mxu0 0.0
    %102 = vmatpush1.xpose.msra.mxu0 0.0
    %103 = vmatprep.subr.mxu0 0.0
    %104 = vmatpush1.xpose.msra.mxu0 0.0
    %105 = vmatprep.subr.mxu0 0.0
    %106 = vmatpush1.xpose.msra.mxu0 0.0
    %107 = vmatprep.subr.mxu0 0.0
    %108 = vmatpush1.xpose.msra.mxu0 0.0
    %109 = vmatprep.subr.mxu0 0.0
    %110 = vmatpush1.xpose.msra.mxu0 0.0
    %111 = vmatprep.subr.mxu0 0.0
    %112 = vmatpush1.xpose.msra.mxu0 0.0
    %113 = vmatprep.subr.mxu0 0.0
    %114 = vmatpush1.xpose.msra.mxu0 0.0
    %115 = vmatprep.subr.mxu0 0.0
    %116 = vmatpush1.xpose.msra.mxu0 0.0
    %117 = vmatprep.subr.mxu0 0.0
    %118 = vmatpush1.xpose.msra.mxu0 0.0
    %119 = vmatprep.subr.mxu0 0.0
    %120 = vmatpush1.xpose.msra.mxu0 0.0
    %121 = vmatprep.subr.mxu0 0.0
    %122 = vmatpush1.xpose.msra.mxu0 0.0
    %123 = vmatprep.subr.mxu0 0.0
    %124 = vmatpush1.xpose.msra.mxu0 0.0
    %125 = vmatprep.subr.mxu0 0.0
    %126 = vmatpush1.xpose.msra.mxu0 0.0
    %127 = vmatprep.subr.mxu0 0.0
    %128 = vmatpush1.xpose.msra.mxu0 0.0
    %129 = vmatprep.subr.mxu0 0.0
    %130 = vmatpush1.xpose.msra.mxu0 0.0
    %131 = vmatprep.subr.mxu0 0.0
    %132 = vmatpush1.xpose.msra.mxu0 0.0
    %133 = vmatprep.subr.mxu0 0.0
    %134 = vmatpush1.xpose.msra.mxu0 0.0
    %135 = vmatprep.subr.mxu0 0.0
    %136 = vmatpush1.xpose.msra.mxu0 0.0
    %137 = vmatprep.subr.mxu0 0.0
    %138 = vmatpush1.xpose.msra.mxu0 0.0
    %139 = vmatprep.mubr.f32.mxu0 0.0
    %v140 = vand.u32 %v60, 4294901760
    %v141 = vsub.f32 %v60, %v140
    %v142 = vand.u32 %v141, 4294901760
    %v143 = vsub.f32 %v141, %v142
    %v144 = vand.u32 %v143, 4294901760
    %145 = vmatmul.mubr.f32.gmra.mrb[0].mxu0 %v144
    %v146 = vpop.f32.mrb[0].mxu0
    %v147 = vadd.f32 %v41, %v146
    %v148 = vpop.f32.mrb[0].mxu0
    %149 = vmatprep.mubr.f32.mxu0 0.0
    %v150 = vand.u32 %v63, 4294901760
    %v151 = vsub.f32 %v63, %v150
    %v152 = vand.u32 %v151, 4294901760
    %v153 = vsub.f32 %v151, %v152
    %v154 = vand.u32 %v153, 4294901760
    %155 = vmatmul.mubr.f32.gmra.mrb[0].mxu0 %v154
    %v156 = vpop.f32.mrb[0].mxu0
    %v157 = vadd.f32 %v46, %v156
    %v158 = vpop.f32.mrb[0].mxu0
    %159 = vmatprep.mubr.f32.mxu0 0.0
    %v160 = vand.u32 %v66, 4294901760
    %v161 = vsub.f32 %v66, %v160
    %v162 = vand.u32 %v161, 4294901760
    %v163 = vsub.f32 %v161, %v162
    %v164 = vand.u32 %v163, 4294901760
    %165 = vmatmul.mubr.f32.gmra.mrb[0].mxu0 %v164
    %v166 = vpop.f32.mrb[0].mxu0
    %v167 = vadd.f32 %v51, %v166
    %v168 = vpop.f32.mrb[0].mxu0
    %169 = vmatprep.mubr.f32.mxu0 0.0
    %v170 = vand.u32 %v69, 4294901760
    %v171 = vsub.f32 %v69, %v170
    %v172 = vand.u32 %v171, 4294901760
    %v173 = vsub.f32 %v171, %v172
    %v174 = vand.u32 %v173, 4294901760
    %175 = vmatmul.mubr.f32.gmra.mrb[0].mxu0 %v174
    %v176 = vpop.f32.mrb[0].mxu0
    %v177 = vadd.f32 %v56, %v176
    %v178 = vpop.f32.mrb[0].mxu0
    %179 = vdwg.mxu0
    %180 = vmatprep.subr.mxu0 0.0
    %v181 = vand.u32 %v72, 4294901760
    %v182 = vsub.f32 %v72, %v181
    %v183 = vand.u32 %v182, 4294901760
    %v184 = vsub.f32 %v182, %v183
    %v185 = vand.u32 %v184, 4294901760
    %186 = vmatpush1.xpose.msra.mxu0 %v185
    %187 = vmatprep.subr.mxu0 0.0
    %188 = vmatpush1.xpose.msra.mxu0 0.0
    %189 = vmatprep.subr.mxu0 0.0
    %190 = vmatpush1.xpose.msra.mxu0 0.0
    %191 = vmatprep.subr.mxu0 0.0
    %192 = vmatpush1.xpose.msra.mxu0 0.0
    %193 = vmatprep.subr.mxu0 0.0
    %194 = vmatpush1.xpose.msra.mxu0 0.0
    %195 = vmatprep.subr.mxu0 0.0
    %196 = vmatpush1.xpose.msra.mxu0 0.0
    %197 = vmatprep.subr.mxu0 0.0
    %198 = vmatpush1.xpose.msra.mxu0 0.0
    %199 = vmatprep.subr.mxu0 0.0
    %200 = vmatpush1.xpose.msra.mxu0 0.0
    %201 = vmatprep.subr.mxu0 0.0
    %202 = vmatpush1.xpose.msra.mxu0 0.0
    %203 = vmatprep.subr.mxu0 0.0
    %204 = vmatpush1.xpose.msra.mxu0 0.0
    %205 = vmatprep.subr.mxu0 0.0
    %206 = vmatpush1.xpose.msra.mxu0 0.0
    %207 = vmatprep.subr.mxu0 0.0
    %208 = vmatpush1.xpose.msra.mxu0 0.0
    %209 = vmatprep.subr.mxu0 0.0
    %210 = vmatpush1.xpose.msra.mxu0 0.0
    %211 = vmatprep.subr.mxu0 0.0
    %212 = vmatpush1.xpose.msra.mxu0 0.0
    %213 = vmatprep.subr.mxu0 0.0
    %214 = vmatpush1.xpose.msra.mxu0 0.0
    %215 = vmatprep.subr.mxu0 0.0
    %216 = vmatpush1.xpose.msra.mxu0 0.0
    %217 = vmatprep.subr.mxu0 0.0
    %218 = vmatpush1.xpose.msra.mxu0 0.0
    %219 = vmatprep.subr.mxu0 0.0
    %220 = vmatpush1.xpose.msra.mxu0 0.0
    %221 = vmatprep.subr.mxu0 0.0
    %222 = vmatpush1.xpose.msra.mxu0 0.0
    %223 = vmatprep.subr.mxu0 0.0
    %224 = vmatpush1.xpose.msra.mxu0 0.0
    %225 = vmatprep.subr.mxu0 0.0
    %226 = vmatpush1.xpose.msra.mxu0 0.0
    %227 = vmatprep.subr.mxu0 0.0
    %228 = vmatpush1.xpose.msra.mxu0 0.0
    %229 = vmatprep.subr.mxu0 0.0
    %230 = vmatpush1.xpose.msra.mxu0 0.0
    %231 = vmatprep.subr.mxu0 0.0
    %232 = vmatpush1.xpose.msra.mxu0 0.0
    %233 = vmatprep.subr.mxu0 0.0
    %234 = vmatpush1.xpose.msra.mxu0 0.0
    %235 = vmatprep.subr.mxu0 0.0
    %236 = vmatpush1.xpose.msra.mxu0 0.0
    %237 = vmatprep.subr.mxu0 0.0
    %238 = vmatpush1.xpose.msra.mxu0 0.0
    %239 = vmatprep.subr.mxu0 0.0
    %240 = vmatpush1.xpose.msra.mxu0 0.0
    %241 = vmatprep.subr.mxu0 0.0
    %242 = vmatpush1.xpose.msra.mxu0 0.0
    %243 = vmatprep.subr.mxu0 0.0
    %244 = vmatpush1.xpose.msra.mxu0 0.0
    %245 = vmatprep.subr.mxu0 0.0
    %246 = vmatpush1.xpose.msra.mxu0 0.0
    %247 = vmatprep.subr.mxu0 0.0
    %248 = vmatpush1.xpose.msra.mxu0 0.0
    %249 = vmatprep.mubr.f32.mxu0 0.0
    %v250 = vand.u32 %v60, 4294901760
    %251 = vmatmul.mubr.f32.gmra.mrb[0].mxu0 %v250
    %v252 = vpop.f32.mrb[0].mxu0
    %v253 = vadd.f32 %v147, %v252
    %v254 = vpop.f32.mrb[0].mxu0
    %255 = vmatprep.mubr.f32.mxu0 0.0
    %v256 = vand.u32 %v63, 4294901760
    %257 = vmatmul.mubr.f32.gmra.mrb[0].mxu0 %v256
    %v258 = vpop.f32.mrb[0].mxu0
    %v259 = vadd.f32 %v157, %v258
    %v260 = vpop.f32.mrb[0].mxu0
    %261 = vmatprep.mubr.f32.mxu0 0.0
    %v262 = vand.u32 %v66, 4294901760
    %263 = vmatmul.mubr.f32.gmra.mrb[0].mxu0 %v262
    %v264 = vpop.f32.mrb[0].mxu0
    %v265 = vadd.f32 %v167, %v264
    %v266 = vpop.f32.mrb[0].mxu0
    %267 = vmatprep.mubr.f32.mxu0 0.0
    %v268 = vand.u32 %v69, 4294901760
    %269 = vmatmul.mubr.f32.gmra.mrb[0].mxu0 %v268
    %v270 = vpop.f32.mrb[0].mxu0
    %v271 = vadd.f32 %v177, %v270
    %v272 = vpop.f32.mrb[0].mxu0
    %273 = vdwg.mxu0
    %274 = vmatprep.subr.mxu0 0.0
    %v275 = vand.u32 %v72, 4294901760
    %v276 = vsub.f32 %v72, %v275
    %277 = vmatpush1.xpose.msra.mxu0 %v276
    %278 = vmatprep.subr.mxu0 0.0
    %279 = vmatpush1.xpose.msra.mxu0 0.0
    %280 = vmatprep.subr.mxu0 0.0
    %281 = vmatpush1.xpose.msra.mxu0 0.0
    %282 = vmatprep.subr.mxu0 0.0
    %283 = vmatpush1.xpose.msra.mxu0 0.0
    %284 = vmatprep.subr.mxu0 0.0
    %285 = vmatpush1.xpose.msra.mxu0 0.0
    %286 = vmatprep.subr.mxu0 0.0
    %287 = vmatpush1.xpose.msra.mxu0 0.0
    %288 = vmatprep.subr.mxu0 0.0
    %289 = vmatpush1.xpose.msra.mxu0 0.0
    %290 = vmatprep.subr.mxu0 0.0
    %291 = vmatpush1.xpose.msra.mxu0 0.0
    %292 = vmatprep.subr.mxu0 0.0
    %293 = vmatpush1.xpose.msra.mxu0 0.0
    %294 = vmatprep.subr.mxu0 0.0
    %295 = vmatpush1.xpose.msra.mxu0 0.0
    %296 = vmatprep.subr.mxu0 0.0
    %297 = vmatpush1.xpose.msra.mxu0 0.0
    %298 = vmatprep.subr.mxu0 0.0
    %299 = vmatpush1.xpose.msra.mxu0 0.0
    %300 = vmatprep.subr.mxu0 0.0
    %301 = vmatpush1.xpose.msra.mxu0 0.0
    %302 = vmatprep.subr.mxu0 0.0
    %303 = vmatpush1.xpose.msra.mxu0 0.0
    %304 = vmatprep.subr.mxu0 0.0
    %305 = vmatpush1.xpose.msra.mxu0 0.0
    %306 = vmatprep.subr.mxu0 0.0
    %307 = vmatpush1.xpose.msra.mxu0 0.0
    %308 = vmatprep.subr.mxu0 0.0
    %309 = vmatpush1.xpose.msra.mxu0 0.0
    %310 = vmatprep.subr.mxu0 0.0
    %311 = vmatpush1.xpose.msra.mxu0 0.0
    %312 = vmatprep.subr.mxu0 0.0
    %313 = vmatpush1.xpose.msra.mxu0 0.0
    %314 = vmatprep.subr.mxu0 0.0
    %315 = vmatpush1.xpose.msra.mxu0 0.0
    %316 = vmatprep.subr.mxu0 0.0
    %317 = vmatpush1.xpose.msra.mxu0 0.0
    %318 = vmatprep.subr.mxu0 0.0
    %319 = vmatpush1.xpose.msra.mxu0 0.0
    %320 = vmatprep.subr.mxu0 0.0
    %321 = vmatpush1.xpose.msra.mxu0 0.0
    %322 = vmatprep.subr.mxu0 0.0
    %323 = vmatpush1.xpose.msra.mxu0 0.0
    %324 = vmatprep.subr.mxu0 0.0
    %325 = vmatpush1.xpose.msra.mxu0 0.0
    %326 = vmatprep.subr.mxu0 0.0
    %327 = vmatpush1.xpose.msra.mxu0 0.0
    %328 = vmatprep.subr.mxu0 0.0
    %329 = vmatpush1.xpose.msra.mxu0 0.0
    %330 = vmatprep.subr.mxu0 0.0
    %331 = vmatpush1.xpose.msra.mxu0 0.0
    %332 = vmatprep.subr.mxu0 0.0
    %333 = vmatpush1.xpose.msra.mxu0 0.0
    %334 = vmatprep.subr.mxu0 0.0
    %335 = vmatpush1.xpose.msra.mxu0 0.0
    %336 = vmatprep.subr.mxu0 0.0
    %337 = vmatpush1.xpose.msra.mxu0 0.0
    %338 = vmatprep.subr.mxu0 0.0
    %339 = vmatpush1.xpose.msra.mxu0 0.0
    %340 = vmatprep.mubr.f32.mxu0 0.0
    %v341 = vand.u32 %v60, 4294901760
    %v342 = vsub.f32 %v60, %v341
    %343 = vmatmul.mubr.f32.gmra.mrb[0].mxu0 %v342
    %v344 = vpop.f32.mrb[0].mxu0
    %v345 = vadd.f32 %v253, %v344
    %v346 = vpop.f32.mrb[0].mxu0
    %347 = vmatprep.mubr.f32.mxu0 0.0
    %v348 = vand.u32 %v63, 4294901760
    %v349 = vsub.f32 %v63, %v348
    %350 = vmatmul.mubr.f32.gmra.mrb[0].mxu0 %v349
    %v351 = vpop.f32.mrb[0].mxu0
    %v352 = vadd.f32 %v259, %v351
    %v353 = vpop.f32.mrb[0].mxu0
    %354 = vmatprep.mubr.f32.mxu0 0.0
    %v355 = vand.u32 %v66, 4294901760
    %v356 = vsub.f32 %v66, %v355
    %357 = vmatmul.mubr.f32.gmra.mrb[0].mxu0 %v356
    %v358 = vpop.f32.mrb[0].mxu0
    %v359 = vadd.f32 %v265, %v358
    %v360 = vpop.f32.mrb[0].mxu0
    %361 = vmatprep.mubr.f32.mxu0 0.0
    %v362 = vand.u32 %v69, 4294901760
    %v363 = vsub.f32 %v69, %v362
    %364 = vmatmul.mubr.f32.gmra.mrb[0].mxu0 %v363
    %v365 = vpop.f32.mrb[0].mxu0
    %v366 = vadd.f32 %v271, %v365
    %v367 = vpop.f32.mrb[0].mxu0
    %368 = vdwg.mxu0
    %369 = vmatprep.subr.mxu0 0.0
    %v370 = vand.u32 %v72, 4294901760
    %371 = vmatpush1.xpose.msra.mxu0 %v370
    %372 = vmatprep.subr.mxu0 0.0
    %373 = vmatpush1.xpose.msra.mxu0 0.0
    %374 = vmatprep.subr.mxu0 0.0
    %375 = vmatpush1.xpose.msra.mxu0 0.0
    %376 = vmatprep.subr.mxu0 0.0
    %377 = vmatpush1.xpose.msra.mxu0 0.0
    %378 = vmatprep.subr.mxu0 0.0
    %379 = vmatpush1.xpose.msra.mxu0 0.0
    %380 = vmatprep.subr.mxu0 0.0
    %381 = vmatpush1.xpose.msra.mxu0 0.0
    %382 = vmatprep.subr.mxu0 0.0
    %383 = vmatpush1.xpose.msra.mxu0 0.0
    %384 = vmatprep.subr.mxu0 0.0
    %385 = vmatpush1.xpose.msra.mxu0 0.0
    %386 = vmatprep.subr.mxu0 0.0
    %387 = vmatpush1.xpose.msra.mxu0 0.0
    %388 = vmatprep.subr.mxu0 0.0
    %389 = vmatpush1.xpose.msra.mxu0 0.0
    %390 = vmatprep.subr.mxu0 0.0
    %391 = vmatpush1.xpose.msra.mxu0 0.0
    %392 = vmatprep.subr.mxu0 0.0
    %393 = vmatpush1.xpose.msra.mxu0 0.0
    %394 = vmatprep.subr.mxu0 0.0
    %395 = vmatpush1.xpose.msra.mxu0 0.0
    %396 = vmatprep.subr.mxu0 0.0
    %397 = vmatpush1.xpose.msra.mxu0 0.0
    %398 = vmatprep.subr.mxu0 0.0
    %399 = vmatpush1.xpose.msra.mxu0 0.0
    %400 = vmatprep.subr.mxu0 0.0
    %401 = vmatpush1.xpose.msra.mxu0 0.0
    %402 = vmatprep.subr.mxu0 0.0
    %403 = vmatpush1.xpose.msra.mxu0 0.0
    %404 = vmatprep.subr.mxu0 0.0
    %405 = vmatpush1.xpose.msra.mxu0 0.0
    %406 = vmatprep.subr.mxu0 0.0
    %407 = vmatpush1.xpose.msra.mxu0 0.0
    %408 = vmatprep.subr.mxu0 0.0
    %409 = vmatpush1.xpose.msra.mxu0 0.0
    %410 = vmatprep.subr.mxu0 0.0
    %411 = vmatpush1.xpose.msra.mxu0 0.0
    %412 = vmatprep.subr.mxu0 0.0
    %413 = vmatpush1.xpose.msra.mxu0 0.0
    %414 = vmatprep.subr.mxu0 0.0
    %415 = vmatpush1.xpose.msra.mxu0 0.0
    %416 = vmatprep.subr.mxu0 0.0
    %417 = vmatpush1.xpose.msra.mxu0 0.0
    %418 = vmatprep.subr.mxu0 0.0
    %419 = vmatpush1.xpose.msra.mxu0 0.0
    %420 = vmatprep.subr.mxu0 0.0
    %421 = vmatpush1.xpose.msra.mxu0 0.0
    %422 = vmatprep.subr.mxu0 0.0
    %423 = vmatpush1.xpose.msra.mxu0 0.0
    %424 = vmatprep.subr.mxu0 0.0
    %425 = vmatpush1.xpose.msra.mxu0 0.0
    %426 = vmatprep.subr.mxu0 0.0
    %427 = vmatpush1.xpose.msra.mxu0 0.0
    %428 = vmatprep.subr.mxu0 0.0
    %429 = vmatpush1.xpose.msra.mxu0 0.0
    %430 = vmatprep.subr.mxu0 0.0
    %431 = vmatpush1.xpose.msra.mxu0 0.0
    %432 = vmatprep.subr.mxu0 0.0
    %433 = vmatpush1.xpose.msra.mxu0 0.0
    %434 = vmatprep.mubr.f32.mxu0 0.0
    %v435 = vand.u32 %v60, 4294901760
    %v436 = vsub.f32 %v60, %v435
    %v437 = vand.u32 %v436, 4294901760
    %438 = vmatmul.mubr.f32.gmra.mrb[0].mxu0 %v437
    %v439 = vpop.f32.mrb[0].mxu0
    %v440 = vadd.f32 %v345, %v439
    %v441 = vpop.f32.mrb[0].mxu0
    %442 = vmatprep.mubr.f32.mxu0 0.0
    %v443 = vand.u32 %v63, 4294901760
    %v444 = vsub.f32 %v63, %v443
    %v445 = vand.u32 %v444, 4294901760
    %446 = vmatmul.mubr.f32.gmra.mrb[0].mxu0 %v445
    %v447 = vpop.f32.mrb[0].mxu0
    %v448 = vadd.f32 %v352, %v447
    %v449 = vpop.f32.mrb[0].mxu0
    %450 = vmatprep.mubr.f32.mxu0 0.0
    %v451 = vand.u32 %v66, 4294901760
    %v452 = vsub.f32 %v66, %v451
    %v453 = vand.u32 %v452, 4294901760
    %454 = vmatmul.mubr.f32.gmra.mrb[0].mxu0 %v453
    %v455 = vpop.f32.mrb[0].mxu0
    %v456 = vadd.f32 %v359, %v455
    %v457 = vpop.f32.mrb[0].mxu0
    %458 = vmatprep.mubr.f32.mxu0 0.0
    %v459 = vand.u32 %v69, 4294901760
    %v460 = vsub.f32 %v69, %v459
    %v461 = vand.u32 %v460, 4294901760
    %462 = vmatmul.mubr.f32.gmra.mrb[0].mxu0 %v461
    %v463 = vpop.f32.mrb[0].mxu0
    %v464 = vadd.f32 %v366, %v463
    %v465 = vpop.f32.mrb[0].mxu0
    %466 = vdwg.mxu0
    %467 = vmatprep.subr.mxu0 0.0
    %v468 = vand.u32 %v72, 4294901760
    %v469 = vsub.f32 %v72, %v468
    %v470 = vand.u32 %v469, 4294901760
    %471 = vmatpush1.xpose.msra.mxu0 %v470
    %472 = vmatprep.subr.mxu0 0.0
    %473 = vmatpush1.xpose.msra.mxu0 0.0
    %474 = vmatprep.subr.mxu0 0.0
    %475 = vmatpush1.xpose.msra.mxu0 0.0
    %476 = vmatprep.subr.mxu0 0.0
    %477 = vmatpush1.xpose.msra.mxu0 0.0
    %478 = vmatprep.subr.mxu0 0.0
    %479 = vmatpush1.xpose.msra.mxu0 0.0
    %480 = vmatprep.subr.mxu0 0.0
    %481 = vmatpush1.xpose.msra.mxu0 0.0
    %482 = vmatprep.subr.mxu0 0.0
    %483 = vmatpush1.xpose.msra.mxu0 0.0
    %484 = vmatprep.subr.mxu0 0.0
    %485 = vmatpush1.xpose.msra.mxu0 0.0
    %486 = vmatprep.subr.mxu0 0.0
    %487 = vmatpush1.xpose.msra.mxu0 0.0
    %488 = vmatprep.subr.mxu0 0.0
    %489 = vmatpush1.xpose.msra.mxu0 0.0
    %490 = vmatprep.subr.mxu0 0.0
    %491 = vmatpush1.xpose.msra.mxu0 0.0
    %492 = vmatprep.subr.mxu0 0.0
    %493 = vmatpush1.xpose.msra.mxu0 0.0
    %494 = vmatprep.subr.mxu0 0.0
    %495 = vmatpush1.xpose.msra.mxu0 0.0
    %496 = vmatprep.subr.mxu0 0.0
    %497 = vmatpush1.xpose.msra.mxu0 0.0
    %498 = vmatprep.subr.mxu0 0.0
    %499 = vmatpush1.xpose.msra.mxu0 0.0
    %500 = vmatprep.subr.mxu0 0.0
    %501 = vmatpush1.xpose.msra.mxu0 0.0
    %502 = vmatprep.subr.mxu0 0.0
    %503 = vmatpush1.xpose.msra.mxu0 0.0
    %504 = vmatprep.subr.mxu0 0.0
    %505 = vmatpush1.xpose.msra.mxu0 0.0
    %506 = vmatprep.subr.mxu0 0.0
    %507 = vmatpush1.xpose.msra.mxu0 0.0
    %508 = vmatprep.subr.mxu0 0.0
    %509 = vmatpush1.xpose.msra.mxu0 0.0
    %510 = vmatprep.subr.mxu0 0.0
    %511 = vmatpush1.xpose.msra.mxu0 0.0
    %512 = vmatprep.subr.mxu0 0.0
    %513 = vmatpush1.xpose.msra.mxu0 0.0
    %514 = vmatprep.subr.mxu0 0.0
    %515 = vmatpush1.xpose.msra.mxu0 0.0
    %516 = vmatprep.subr.mxu0 0.0
    %517 = vmatpush1.xpose.msra.mxu0 0.0
    %518 = vmatprep.subr.mxu0 0.0
    %519 = vmatpush1.xpose.msra.mxu0 0.0
    %520 = vmatprep.subr.mxu0 0.0
    %521 = vmatpush1.xpose.msra.mxu0 0.0
    %522 = vmatprep.subr.mxu0 0.0
    %523 = vmatpush1.xpose.msra.mxu0 0.0
    %524 = vmatprep.subr.mxu0 0.0
    %525 = vmatpush1.xpose.msra.mxu0 0.0
    %526 = vmatprep.subr.mxu0 0.0
    %527 = vmatpush1.xpose.msra.mxu0 0.0
    %528 = vmatprep.subr.mxu0 0.0
    %529 = vmatpush1.xpose.msra.mxu0 0.0
    %530 = vmatprep.subr.mxu0 0.0
    %531 = vmatpush1.xpose.msra.mxu0 0.0
    %532 = vmatprep.subr.mxu0 0.0
    %533 = vmatpush1.xpose.msra.mxu0 0.0
    %534 = vmatprep.mubr.f32.mxu0 0.0
    %v535 = vand.u32 %v60, 4294901760
    %536 = vmatmul.mubr.f32.gmra.mrb[0].mxu0 %v535
    %v537 = vpop.f32.mrb[0].mxu0
    %v538 = vadd.f32 %v440, %v537
    %v539 = vpop.f32.mrb[0].mxu0
    %540 = vmatprep.mubr.f32.mxu0 0.0
    %v541 = vand.u32 %v63, 4294901760
    %542 = vmatmul.mubr.f32.gmra.mrb[0].mxu0 %v541
    %v543 = vpop.f32.mrb[0].mxu0
    %v544 = vadd.f32 %v448, %v543
    %v545 = vpop.f32.mrb[0].mxu0
    %546 = vmatprep.mubr.f32.mxu0 0.0
    %v547 = vand.u32 %v66, 4294901760
    %548 = vmatmul.mubr.f32.gmra.mrb[0].mxu0 %v547
    %v549 = vpop.f32.mrb[0].mxu0
    %v550 = vadd.f32 %v456, %v549
    %v551 = vpop.f32.mrb[0].mxu0
    %552 = vmatprep.mubr.f32.mxu0 0.0
    %v553 = vand.u32 %v69, 4294901760
    %554 = vmatmul.mubr.f32.gmra.mrb[0].mxu0 %v553
    %v555 = vpop.f32.mrb[0].mxu0
    %v556 = vadd.f32 %v464, %v555
    %v557 = vpop.f32.mrb[0].mxu0
    %558 = vdwg.mxu0
    %559 = vmatprep.subr.mxu0 0.0
    %v560 = vand.u32 %v72, 4294901760
    %561 = vmatpush1.xpose.msra.mxu0 %v560
    %562 = vmatprep.subr.mxu0 0.0
    %563 = vmatpush1.xpose.msra.mxu0 0.0
    %564 = vmatprep.subr.mxu0 0.0
    %565 = vmatpush1.xpose.msra.mxu0 0.0
    %566 = vmatprep.subr.mxu0 0.0
    %567 = vmatpush1.xpose.msra.mxu0 0.0
    %568 = vmatprep.subr.mxu0 0.0
    %569 = vmatpush1.xpose.msra.mxu0 0.0
    %570 = vmatprep.subr.mxu0 0.0
    %571 = vmatpush1.xpose.msra.mxu0 0.0
    %572 = vmatprep.subr.mxu0 0.0
    %573 = vmatpush1.xpose.msra.mxu0 0.0
    %574 = vmatprep.subr.mxu0 0.0
    %575 = vmatpush1.xpose.msra.mxu0 0.0
    %576 = vmatprep.subr.mxu0 0.0
    %577 = vmatpush1.xpose.msra.mxu0 0.0
    %578 = vmatprep.subr.mxu0 0.0
    %579 = vmatpush1.xpose.msra.mxu0 0.0
    %580 = vmatprep.subr.mxu0 0.0
    %581 = vmatpush1.xpose.msra.mxu0 0.0
    %582 = vmatprep.subr.mxu0 0.0
    %583 = vmatpush1.xpose.msra.mxu0 0.0
    %584 = vmatprep.subr.mxu0 0.0
    %585 = vmatpush1.xpose.msra.mxu0 0.0
    %586 = vmatprep.subr.mxu0 0.0
    %587 = vmatpush1.xpose.msra.mxu0 0.0
    %588 = vmatprep.subr.mxu0 0.0
    %589 = vmatpush1.xpose.msra.mxu0 0.0
    %590 = vmatprep.subr.mxu0 0.0
    %591 = vmatpush1.xpose.msra.mxu0 0.0
    %592 = vmatprep.subr.mxu0 0.0
    %593 = vmatpush1.xpose.msra.mxu0 0.0
    %594 = vmatprep.subr.mxu0 0.0
    %595 = vmatpush1.xpose.msra.mxu0 0.0
    %596 = vmatprep.subr.mxu0 0.0
    %597 = vmatpush1.xpose.msra.mxu0 0.0
    %598 = vmatprep.subr.mxu0 0.0
    %599 = vmatpush1.xpose.msra.mxu0 0.0
    %600 = vmatprep.subr.mxu0 0.0
    %601 = vmatpush1.xpose.msra.mxu0 0.0
    %602 = vmatprep.subr.mxu0 0.0
    %603 = vmatpush1.xpose.msra.mxu0 0.0
    %604 = vmatprep.subr.mxu0 0.0
    %605 = vmatpush1.xpose.msra.mxu0 0.0
    %606 = vmatprep.subr.mxu0 0.0
    %607 = vmatpush1.xpose.msra.mxu0 0.0
    %608 = vmatprep.subr.mxu0 0.0
    %609 = vmatpush1.xpose.msra.mxu0 0.0
    %610 = vmatprep.subr.mxu0 0.0
    %611 = vmatpush1.xpose.msra.mxu0 0.0
    %612 = vmatprep.subr.mxu0 0.0
    %613 = vmatpush1.xpose.msra.mxu0 0.0
    %614 = vmatprep.subr.mxu0 0.0
    %615 = vmatpush1.xpose.msra.mxu0 0.0
    %616 = vmatprep.subr.mxu0 0.0
    %617 = vmatpush1.xpose.msra.mxu0 0.0
    %618 = vmatprep.subr.mxu0 0.0
    %619 = vmatpush1.xpose.msra.mxu0 0.0
    %620 = vmatprep.subr.mxu0 0.0
    %621 = vmatpush1.xpose.msra.mxu0 0.0
    %622 = vmatprep.subr.mxu0 0.0
    %623 = vmatpush1.xpose.msra.mxu0 0.0
    %624 = vmatprep.mubr.f32.mxu0 0.0
    %v625 = vand.u32 %v60, 4294901760
    %626 = vmatmul.mubr.f32.gmra.mrb[0].mxu0 %v625
    %v627 = vpop.f32.mrb[0].mxu0
    %v628 = vadd.f32 %v538, %v627
    %v629 = vpop.f32.mrb[0].mxu0
    %630 = vmatprep.mubr.f32.mxu0 0.0
    %v631 = vand.u32 %v63, 4294901760
    %632 = vmatmul.mubr.f32.gmra.mrb[0].mxu0 %v631
    %v633 = vpop.f32.mrb[0].mxu0
    %v634 = vadd.f32 %v544, %v633
    %v635 = vpop.f32.mrb[0].mxu0
    %636 = vmatprep.mubr.f32.mxu0 0.0
    %v637 = vand.u32 %v66, 4294901760
    %638 = vmatmul.mubr.f32.gmra.mrb[0].mxu0 %v637
    %v639 = vpop.f32.mrb[0].mxu0
    %v640 = vadd.f32 %v550, %v639
    %v641 = vpop.f32.mrb[0].mxu0
    %642 = vmatprep.mubr.f32.mxu0 0.0
    %v643 = vand.u32 %v69, 4294901760
    %644 = vmatmul.mubr.f32.gmra.mrb[0].mxu0 %v643
    %v645 = vpop.f32.mrb[0].mxu0
    %v646 = vadd.f32 %v556, %v645
    %v647 = vpop.f32.mrb[0].mxu0
    %648 = vdwg.mxu0
    %v649 = vmax.f32 %v628, 0.0
    %v650 = vmax.f32 %v634, 0.0
    %v651 = vmax.f32 %v640, 0.0
    %v652 = vmax.f32 %v646, 0.0
    %v653 = vld [vmem:[%s3] sm:$0xff]
    %v654 = vld [vmem:[%s3 + $0x8] sm:$0xff]
    %v655 = vld [vmem:[%s3 + $0x10] sm:$0xff]
    %v656 = vld [vmem:[%s3 + $0x18] sm:$0xff]
    %v657 = vld [vmem:[%s4] sm:$0xff]
    %v658 = vld [vmem:[%s4 + $0x8] sm:$0xff]
    %v659 = vld [vmem:[%s4 + $0x10] sm:$0xff]
    %v660 = vld [vmem:[%s4 + $0x18] sm:$0xff]
    %662 = vset.pattern.permute.xlu0 0
    %663 = vperm.xlu0 %662, %v657
    %v664 = vpop.permute.xlu0 %663
    %667 = vset.pattern.permute.xlu0 0
    %668 = vperm.xlu0 %667, %v658
    %v669 = vpop.permute.xlu0 %668
    %672 = vset.pattern.permute.xlu0 0
    %673 = vperm.xlu0 %672, %v659
    %v674 = vpop.permute.xlu0 %673
    %677 = vset.pattern.permute.xlu0 0
    %678 = vperm.xlu0 %677, %v660
    %v679 = vpop.permute.xlu0 %678
    %vm681 = vcmask 261120
    %v683 = vsel %vm681, %v653, 0
    %v686 = vsel %vm681, %v654, 0
    %v689 = vsel %vm681, %v655, 0
    %v692 = vsel %vm681, %v656, 0
    %694 = vmatprep.subr.mxu0 0.0
    %v695 = vand.u32 %v649, 4294901760
    %696 = vmatpush1.msra.mxu0 %v695
    %697 = vmatprep.subr.mxu0 0.0
    %v698 = vand.u32 %v650, 4294901760
    %699 = vmatpush1.msra.mxu0 %v698
    %700 = vmatprep.subr.mxu0 0.0
    %v701 = vand.u32 %v651, 4294901760
    %702 = vmatpush1.msra.mxu0 %v701
    %703 = vmatprep.subr.mxu0 0.0
    %v704 = vand.u32 %v652, 4294901760
    %705 = vmatpush1.msra.mxu0 %v704
    %706 = vmatprep.subr.mxu0 0.0
    %707 = vmatpush1.msra.mxu0 0.0
    %708 = vmatprep.subr.mxu0 0.0
    %709 = vmatpush1.msra.mxu0 0.0
    %710 = vmatprep.subr.mxu0 0.0
    %711 = vmatpush1.msra.mxu0 0.0
    %712 = vmatprep.subr.mxu0 0.0
    %713 = vmatpush1.msra.mxu0 0.0
    %714 = vmatprep.subr.mxu0 0.0
    %715 = vmatpush1.msra.mxu0 0.0
    %716 = vmatprep.subr.mxu0 0.0
    %717 = vmatpush1.msra.mxu0 0.0
    %718 = vmatprep.subr.mxu0 0.0
    %719 = vmatpush1.msra.mxu0 0.0
    %720 = vmatprep.subr.mxu0 0.0
    %721 = vmatpush1.msra.mxu0 0.0
    %722 = vmatprep.subr.mxu0 0.0
    %723 = vmatpush1.msra.mxu0 0.0
    %724 = vmatprep.subr.mxu0 0.0
    %725 = vmatpush1.msra.mxu0 0.0
    %726 = vmatprep.subr.mxu0 0.0
    %727 = vmatpush1.msra.mxu0 0.0
    %728 = vmatprep.subr.mxu0 0.0
    %729 = vmatpush1.msra.mxu0 0.0
    %730 = vmatprep.subr.mxu0 0.0
    %731 = vmatpush1.msra.mxu0 0.0
    %732 = vmatprep.subr.mxu0 0.0
    %733 = vmatpush1.msra.mxu0 0.0
    %734 = vmatprep.subr.mxu0 0.0
    %735 = vmatpush1.msra.mxu0 0.0
    %736 = vmatprep.subr.mxu0 0.0
    %737 = vmatpush1.msra.mxu0 0.0
    %738 = vmatprep.subr.mxu0 0.0
    %739 = vmatpush1.msra.mxu0 0.0
    %740 = vmatprep.subr.mxu0 0.0
    %741 = vmatpush1.msra.mxu0 0.0
    %742 = vmatprep.subr.mxu0 0.0
    %743 = vmatpush1.msra.mxu0 0.0
    %744 = vmatprep.subr.mxu0 0.0
    %745 = vmatpush1.msra.mxu0 0.0
    %746 = vmatprep.subr.mxu0 0.0
    %747 = vmatpush1.msra.mxu0 0.0
    %748 = vmatprep.subr.mxu0 0.0
    %749 = vmatpush1.msra.mxu0 0.0
    %750 = vmatprep.subr.mxu0 0.0
    %751 = vmatpush1.msra.mxu0 0.0
    %752 = vmatprep.subr.mxu0 0.0
    %753 = vmatpush1.msra.mxu0 0.0
    %754 = vmatprep.subr.mxu0 0.0
    %755 = vmatpush1.msra.mxu0 0.0
    %756 = vmatprep.subr.mxu0 0.0
    %757 = vmatpush1.msra.mxu0 0.0
    %758 = vmatprep.subr.mxu0 0.0
    %759 = vmatpush1.msra.mxu0 0.0
    %760 = vmatprep.subr.mxu0 0.0
    %761 = vmatpush1.msra.mxu0 0.0
    %762 = vmatprep.mubr.f32.mxu0 0.0
    %v763 = vand.u32 %v683, 4294901760
    %v764 = vsub.f32 %v683, %v763
    %v765 = vand.u32 %v764, 4294901760
    %v766 = vsub.f32 %v764, %v765
    %v767 = vand.u32 %v766, 4294901760
    %768 = vmatmul.mubr.f32.gmra.mrb[0].mxu0 %v767
    %v769 = vpop.f32.mrb[0].mxu0
    %v770 = vadd.f32 %v664, %v769
    %v771 = vpop.f32.mrb[0].mxu0
    %772 = vmatprep.mubr.f32.mxu0 0.0
    %v773 = vand.u32 %v686, 4294901760
    %v774 = vsub.f32 %v686, %v773
    %v775 = vand.u32 %v774, 4294901760
    %v776 = vsub.f32 %v774, %v775
    %v777 = vand.u32 %v776, 4294901760
    %778 = vmatmul.mubr.f32.gmra.mrb[0].mxu0 %v777
    %v779 = vpop.f32.mrb[0].mxu0
    %v780 = vadd.f32 %v669, %v779
    %v781 = vpop.f32.mrb[0].mxu0
    %782 = vmatprep.mubr.f32.mxu0 0.0
    %v783 = vand.u32 %v689, 4294901760
    %v784 = vsub.f32 %v689, %v783
    %v785 = vand.u32 %v784, 4294901760
    %v786 = vsub.f32 %v784, %v785
    %v787 = vand.u32 %v786, 4294901760
    %788 = vmatmul.mubr.f32.gmra.mrb[0].mxu0 %v787
    %v789 = vpop.f32.mrb[0].mxu0
    %v790 = vadd.f32 %v674, %v789
    %v791 = vpop.f32.mrb[0].mxu0
    %792 = vmatprep.mubr.f32.mxu0 0.0
    %v793 = vand.u32 %v692, 4294901760
    %v794 = vsub.f32 %v692, %v793
    %v795 = vand.u32 %v794, 4294901760
    %v796 = vsub.f32 %v794, %v795
    %v797 = vand.u32 %v796, 4294901760
    %798 = vmatmul.mubr.f32.gmra.mrb[0].mxu0 %v797
    %v799 = vpop.f32.mrb[0].mxu0
    %v800 = vadd.f32 %v679, %v799
    %v801 = vpop.f32.mrb[0].mxu0
    %802 = vdwg.mxu0
    %803 = vmatprep.subr.mxu0 0.0
    %v804 = vand.u32 %v649, 4294901760
    %v805 = vsub.f32 %v649, %v804
    %v806 = vand.u32 %v805, 4294901760
    %v807 = vsub.f32 %v805, %v806
    %v808 = vand.u32 %v807, 4294901760
    %809 = vmatpush1.msra.mxu0 %v808
    %810 = vmatprep.subr.mxu0 0.0
    %v811 = vand.u32 %v650, 4294901760
    %v812 = vsub.f32 %v650, %v811
    %v813 = vand.u32 %v812, 4294901760
    %v814 = vsub.f32 %v812, %v813
    %v815 = vand.u32 %v814, 4294901760
    %816 = vmatpush1.msra.mxu0 %v815
    %817 = vmatprep.subr.mxu0 0.0
    %v818 = vand.u32 %v651, 4294901760
    %v819 = vsub.f32 %v651, %v818
    %v820 = vand.u32 %v819, 4294901760
    %v821 = vsub.f32 %v819, %v820
    %v822 = vand.u32 %v821, 4294901760
    %823 = vmatpush1.msra.mxu0 %v822
    %824 = vmatprep.subr.mxu0 0.0
    %v825 = vand.u32 %v652, 4294901760
    %v826 = vsub.f32 %v652, %v825
    %v827 = vand.u32 %v826, 4294901760
    %v828 = vsub.f32 %v826, %v827
    %v829 = vand.u32 %v828, 4294901760
    %830 = vmatpush1.msra.mxu0 %v829
    %831 = vmatprep.subr.mxu0 0.0
    %832 = vmatpush1.msra.mxu0 0.0
    %833 = vmatprep.subr.mxu0 0.0
    %834 = vmatpush1.msra.mxu0 0.0
    %835 = vmatprep.subr.mxu0 0.0
    %836 = vmatpush1.msra.mxu0 0.0
    %837 = vmatprep.subr.mxu0 0.0
    %838 = vmatpush1.msra.mxu0 0.0
    %839 = vmatprep.subr.mxu0 0.0
    %840 = vmatpush1.msra.mxu0 0.0
    %841 = vmatprep.subr.mxu0 0.0
    %842 = vmatpush1.msra.mxu0 0.0
    %843 = vmatprep.subr.mxu0 0.0
    %844 = vmatpush1.msra.mxu0 0.0
    %845 = vmatprep.subr.mxu0 0.0
    %846 = vmatpush1.msra.mxu0 0.0
    %847 = vmatprep.subr.mxu0 0.0
    %848 = vmatpush1.msra.mxu0 0.0
    %849 = vmatprep.subr.mxu0 0.0
    %850 = vmatpush1.msra.mxu0 0.0
    %851 = vmatprep.subr.mxu0 0.0
    %852 = vmatpush1.msra.mxu0 0.0
    %853 = vmatprep.subr.mxu0 0.0
    %854 = vmatpush1.msra.mxu0 0.0
    %855 = vmatprep.subr.mxu0 0.0
    %856 = vmatpush1.msra.mxu0 0.0
    %857 = vmatprep.subr.mxu0 0.0
    %858 = vmatpush1.msra.mxu0 0.0
    %859 = vmatprep.subr.mxu0 0.0
    %860 = vmatpush1.msra.mxu0 0.0
    %861 = vmatprep.subr.mxu0 0.0
    %862 = vmatpush1.msra.mxu0 0.0
    %863 = vmatprep.subr.mxu0 0.0
    %864 = vmatpush1.msra.mxu0 0.0
    %865 = vmatprep.subr.mxu0 0.0
    %866 = vmatpush1.msra.mxu0 0.0
    %867 = vmatprep.subr.mxu0 0.0
    %868 = vmatpush1.msra.mxu0 0.0
    %869 = vmatprep.subr.mxu0 0.0
    %870 = vmatpush1.msra.mxu0 0.0
    %871 = vmatprep.subr.mxu0 0.0
    %872 = vmatpush1.msra.mxu0 0.0
    %873 = vmatprep.subr.mxu0 0.0
    %874 = vmatpush1.msra.mxu0 0.0
    %875 = vmatprep.subr.mxu0 0.0
    %876 = vmatpush1.msra.mxu0 0.0
    %877 = vmatprep.subr.mxu0 0.0
    %878 = vmatpush1.msra.mxu0 0.0
    %879 = vmatprep.subr.mxu0 0.0
    %880 = vmatpush1.msra.mxu0 0.0
    %881 = vmatprep.subr.mxu0 0.0
    %882 = vmatpush1.msra.mxu0 0.0
    %883 = vmatprep.subr.mxu0 0.0
    %884 = vmatpush1.msra.mxu0 0.0
    %885 = vmatprep.subr.mxu0 0.0
    %886 = vmatpush1.msra.mxu0 0.0
    %887 = vmatprep.mubr.f32.mxu0 0.0
    %v888 = vand.u32 %v683, 4294901760
    %889 = vmatmul.mubr.f32.gmra.mrb[0].mxu0 %v888
    %v890 = vpop.f32.mrb[0].mxu0
    %v891 = vadd.f32 %v770, %v890
    %v892 = vpop.f32.mrb[0].mxu0
    %893 = vmatprep.mubr.f32.mxu0 0.0
    %v894 = vand.u32 %v686, 4294901760
    %895 = vmatmul.mubr.f32.gmra.mrb[0].mxu0 %v894
    %v896 = vpop.f32.mrb[0].mxu0
    %v897 = vadd.f32 %v780, %v896
    %v898 = vpop.f32.mrb[0].mxu0
    %899 = vmatprep.mubr.f32.mxu0 0.0
    %v900 = vand.u32 %v689, 4294901760
    %901 = vmatmul.mubr.f32.gmra.mrb[0].mxu0 %v900
    %v902 = vpop.f32.mrb[0].mxu0
    %v903 = vadd.f32 %v790, %v902
    %v904 = vpop.f32.mrb[0].mxu0
    %905 = vmatprep.mubr.f32.mxu0 0.0
    %v906 = vand.u32 %v692, 4294901760
    %907 = vmatmul.mubr.f32.gmra.mrb[0].mxu0 %v906
    %v908 = vpop.f32.mrb[0].mxu0
    %v909 = vadd.f32 %v800, %v908
    %v910 = vpop.f32.mrb[0].mxu0
    %911 = vdwg.mxu0
    %912 = vmatprep.subr.mxu0 0.0
    %v913 = vand.u32 %v649, 4294901760
    %v914 = vsub.f32 %v649, %v913
    %915 = vmatpush1.msra.mxu0 %v914
    %916 = vmatprep.subr.mxu0 0.0
    %v917 = vand.u32 %v650, 4294901760
    %v918 = vsub.f32 %v650, %v917
    %919 = vmatpush1.msra.mxu0 %v918
    %920 = vmatprep.subr.mxu0 0.0
    %v921 = vand.u32 %v651, 4294901760
    %v922 = vsub.f32 %v651, %v921
    %923 = vmatpush1.msra.mxu0 %v922
    %924 = vmatprep.subr.mxu0 0.0
    %v925 = vand.u32 %v652, 4294901760
    %v926 = vsub.f32 %v652, %v925
    %927 = vmatpush1.msra.mxu0 %v926
    %928 = vmatprep.subr.mxu0 0.0
    %929 = vmatpush1.msra.mxu0 0.0
    %930 = vmatprep.subr.mxu0 0.0
    %931 = vmatpush1.msra.mxu0 0.0
    %932 = vmatprep.subr.mxu0 0.0
    %933 = vmatpush1.msra.mxu0 0.0
    %934 = vmatprep.subr.mxu0 0.0
    %935 = vmatpush1.msra.mxu0 0.0
    %936 = vmatprep.subr.mxu0 0.0
    %937 = vmatpush1.msra.mxu0 0.0
    %938 = vmatprep.subr.mxu0 0.0
    %939 = vmatpush1.msra.mxu0 0.0
    %940 = vmatprep.subr.mxu0 0.0
    %941 = vmatpush1.msra.mxu0 0.0
    %942 = vmatprep.subr.mxu0 0.0
    %943 = vmatpush1.msra.mxu0 0.0
    %944 = vmatprep.subr.mxu0 0.0
    %945 = vmatpush1.msra.mxu0 0.0
    %946 = vmatprep.subr.mxu0 0.0
    %947 = vmatpush1.msra.mxu0 0.0
    %948 = vmatprep.subr.mxu0 0.0
    %949 = vmatpush1.msra.mxu0 0.0
    %950 = vmatprep.subr.mxu0 0.0
    %951 = vmatpush1.msra.mxu0 0.0
    %952 = vmatprep.subr.mxu0 0.0
    %953 = vmatpush1.msra.mxu0 0.0
    %954 = vmatprep.subr.mxu0 0.0
    %955 = vmatpush1.msra.mxu0 0.0
    %956 = vmatprep.subr.mxu0 0.0
    %957 = vmatpush1.msra.mxu0 0.0
    %958 = vmatprep.subr.mxu0 0.0
    %959 = vmatpush1.msra.mxu0 0.0
    %960 = vmatprep.subr.mxu0 0.0
    %961 = vmatpush1.msra.mxu0 0.0
    %962 = vmatprep.subr.mxu0 0.0
    %963 = vmatpush1.msra.mxu0 0.0
    %964 = vmatprep.subr.mxu0 0.0
    %965 = vmatpush1.msra.mxu0 0.0
    %966 = vmatprep.subr.mxu0 0.0
    %967 = vmatpush1.msra.mxu0 0.0
    %968 = vmatprep.subr.mxu0 0.0
    %969 = vmatpush1.msra.mxu0 0.0
    %970 = vmatprep.subr.mxu0 0.0
    %971 = vmatpush1.msra.mxu0 0.0
    %972 = vmatprep.subr.mxu0 0.0
    %973 = vmatpush1.msra.mxu0 0.0
    %974 = vmatprep.subr.mxu0 0.0
    %975 = vmatpush1.msra.mxu0 0.0
    %976 = vmatprep.subr.mxu0 0.0
    %977 = vmatpush1.msra.mxu0 0.0
    %978 = vmatprep.subr.mxu0 0.0
    %979 = vmatpush1.msra.mxu0 0.0
    %980 = vmatprep.subr.mxu0 0.0
    %981 = vmatpush1.msra.mxu0 0.0
    %982 = vmatprep.subr.mxu0 0.0
    %983 = vmatpush1.msra.mxu0 0.0
    %984 = vmatprep.mubr.f32.mxu0 0.0
    %v985 = vand.u32 %v683, 4294901760
    %v986 = vsub.f32 %v683, %v985
    %987 = vmatmul.mubr.f32.gmra.mrb[0].mxu0 %v986
    %v988 = vpop.f32.mrb[0].mxu0
    %v989 = vadd.f32 %v891, %v988
    %v990 = vpop.f32.mrb[0].mxu0
    %991 = vmatprep.mubr.f32.mxu0 0.0
    %v992 = vand.u32 %v686, 4294901760
    %v993 = vsub.f32 %v686, %v992
    %994 = vmatmul.mubr.f32.gmra.mrb[0].mxu0 %v993
    %v995 = vpop.f32.mrb[0].mxu0
    %v996 = vadd.f32 %v897, %v995
    %v997 = vpop.f32.mrb[0].mxu0
    %998 = vmatprep.mubr.f32.mxu0 0.0
    %v999 = vand.u32 %v689, 4294901760
    %v1000 = vsub.f32 %v689, %v999
    %1001 = vmatmul.mubr.f32.gmra.mrb[0].mxu0 %v1000
    %v1002 = vpop.f32.mrb[0].mxu0
    %v1003 = vadd.f32 %v903, %v1002
    %v1004 = vpop.f32.mrb[0].mxu0
    %1005 = vmatprep.mubr.f32.mxu0 0.0
    %v1006 = vand.u32 %v692, 4294901760
    %v1007 = vsub.f32 %v692, %v1006
    %1008 = vmatmul.mubr.f32.gmra.mrb[0].mxu0 %v1007
    %v1009 = vpop.f32.mrb[0].mxu0
    %v1010 = vadd.f32 %v909, %v1009
    %v1011 = vpop.f32.mrb[0].mxu0
    %1012 = vdwg.mxu0
    %1013 = vmatprep.subr.mxu0 0.0
    %v1014 = vand.u32 %v649, 4294901760
    %1015 = vmatpush1.msra.mxu0 %v1014
    %1016 = vmatprep.subr.mxu0 0.0
    %v1017 = vand.u32 %v650, 4294901760
    %1018 = vmatpush1.msra.mxu0 %v1017
    %1019 = vmatprep.subr.mxu0 0.0
    %v1020 = vand.u32 %v651, 4294901760
    %1021 = vmatpush1.msra.mxu0 %v1020
    %1022 = vmatprep.subr.mxu0 0.0
    %v1023 = vand.u32 %v652, 4294901760
    %1024 = vmatpush1.msra.mxu0 %v1023
    %1025 = vmatprep.subr.mxu0 0.0
    %1026 = vmatpush1.msra.mxu0 0.0
    %1027 = vmatprep.subr.mxu0 0.0
    %1028 = vmatpush1.msra.mxu0 0.0
    %1029 = vmatprep.subr.mxu0 0.0
    %1030 = vmatpush1.msra.mxu0 0.0
    %1031 = vmatprep.subr.mxu0 0.0
    %1032 = vmatpush1.msra.mxu0 0.0
    %1033 = vmatprep.subr.mxu0 0.0
    %1034 = vmatpush1.msra.mxu0 0.0
    %1035 = vmatprep.subr.mxu0 0.0
    %1036 = vmatpush1.msra.mxu0 0.0
    %1037 = vmatprep.subr.mxu0 0.0
    %1038 = vmatpush1.msra.mxu0 0.0
    %1039 = vmatprep.subr.mxu0 0.0
    %1040 = vmatpush1.msra.mxu0 0.0
    %1041 = vmatprep.subr.mxu0 0.0
    %1042 = vmatpush1.msra.mxu0 0.0
    %1043 = vmatprep.subr.mxu0 0.0
    %1044 = vmatpush1.msra.mxu0 0.0
    %1045 = vmatprep.subr.mxu0 0.0
    %1046 = vmatpush1.msra.mxu0 0.0
    %1047 = vmatprep.subr.mxu0 0.0
    %1048 = vmatpush1.msra.mxu0 0.0
    %1049 = vmatprep.subr.mxu0 0.0
    %1050 = vmatpush1.msra.mxu0 0.0
    %1051 = vmatprep.subr.mxu0 0.0
    %1052 = vmatpush1.msra.mxu0 0.0
    %1053 = vmatprep.subr.mxu0 0.0
    %1054 = vmatpush1.msra.mxu0 0.0
    %1055 = vmatprep.subr.mxu0 0.0
    %1056 = vmatpush1.msra.mxu0 0.0
    %1057 = vmatprep.subr.mxu0 0.0
    %1058 = vmatpush1.msra.mxu0 0.0
    %1059 = vmatprep.subr.mxu0 0.0
    %1060 = vmatpush1.msra.mxu0 0.0
    %1061 = vmatprep.subr.mxu0 0.0
    %1062 = vmatpush1.msra.mxu0 0.0
    %1063 = vmatprep.subr.mxu0 0.0
    %1064 = vmatpush1.msra.mxu0 0.0
    %1065 = vmatprep.subr.mxu0 0.0
    %1066 = vmatpush1.msra.mxu0 0.0
    %1067 = vmatprep.subr.mxu0 0.0
    %1068 = vmatpush1.msra.mxu0 0.0
    %1069 = vmatprep.subr.mxu0 0.0
    %1070 = vmatpush1.msra.mxu0 0.0
    %1071 = vmatprep.subr.mxu0 0.0
    %1072 = vmatpush1.msra.mxu0 0.0
    %1073 = vmatprep.subr.mxu0 0.0
    %1074 = vmatpush1.msra.mxu0 0.0
    %1075 = vmatprep.subr.mxu0 0.0
    %1076 = vmatpush1.msra.mxu0 0.0
    %1077 = vmatprep.subr.mxu0 0.0
    %1078 = vmatpush1.msra.mxu0 0.0
    %1079 = vmatprep.subr.mxu0 0.0
    %1080 = vmatpush1.msra.mxu0 0.0
    %1081 = vmatprep.mubr.f32.mxu0 0.0
    %v1082 = vand.u32 %v683, 4294901760
    %v1083 = vsub.f32 %v683, %v1082
    %v1084 = vand.u32 %v1083, 4294901760
    %1085 = vmatmul.mubr.f32.gmra.mrb[0].mxu0 %v1084
    %v1086 = vpop.f32.mrb[0].mxu0
    %v1087 = vadd.f32 %v989, %v1086
    %v1088 = vpop.f32.mrb[0].mxu0
    %1089 = vmatprep.mubr.f32.mxu0 0.0
    %v1090 = vand.u32 %v686, 4294901760
    %v1091 = vsub.f32 %v686, %v1090
    %v1092 = vand.u32 %v1091, 4294901760
    %1093 = vmatmul.mubr.f32.gmra.mrb[0].mxu0 %v1092
    %v1094 = vpop.f32.mrb[0].mxu0
    %v1095 = vadd.f32 %v996, %v1094
    %v1096 = vpop.f32.mrb[0].mxu0
    %1097 = vmatprep.mubr.f32.mxu0 0.0
    %v1098 = vand.u32 %v689, 4294901760
    %v1099 = vsub.f32 %v689, %v1098
    %v1100 = vand.u32 %v1099, 4294901760
    %1101 = vmatmul.mubr.f32.gmra.mrb[0].mxu0 %v1100
    %v1102 = vpop.f32.mrb[0].mxu0
    %v1103 = vadd.f32 %v1003, %v1102
    %v1104 = vpop.f32.mrb[0].mxu0
    %1105 = vmatprep.mubr.f32.mxu0 0.0
    %v1106 = vand.u32 %v692, 4294901760
    %v1107 = vsub.f32 %v692, %v1106
    %v1108 = vand.u32 %v1107, 4294901760
    %1109 = vmatmul.mubr.f32.gmra.mrb[0].mxu0 %v1108
    %v1110 = vpop.f32.mrb[0].mxu0
    %v1111 = vadd.f32 %v1010, %v1110
    %v1112 = vpop.f32.mrb[0].mxu0
    %1113 = vdwg.mxu0
    %1114 = vmatprep.subr.mxu0 0.0
    %v1115 = vand.u32 %v649, 4294901760
    %v1116 = vsub.f32 %v649, %v1115
    %v1117 = vand.u32 %v1116, 4294901760
    %1118 = vmatpush1.msra.mxu0 %v1117
    %1119 = vmatprep.subr.mxu0 0.0
    %v1120 = vand.u32 %v650, 4294901760
    %v1121 = vsub.f32 %v650, %v1120
    %v1122 = vand.u32 %v1121, 4294901760
    %1123 = vmatpush1.msra.mxu0 %v1122
    %1124 = vmatprep.subr.mxu0 0.0
    %v1125 = vand.u32 %v651, 4294901760
    %v1126 = vsub.f32 %v651, %v1125
    %v1127 = vand.u32 %v1126, 4294901760
    %1128 = vmatpush1.msra.mxu0 %v1127
    %1129 = vmatprep.subr.mxu0 0.0
    %v1130 = vand.u32 %v652, 4294901760
    %v1131 = vsub.f32 %v652, %v1130
    %v1132 = vand.u32 %v1131, 4294901760
    %1133 = vmatpush1.msra.mxu0 %v1132
    %1134 = vmatprep.subr.mxu0 0.0
    %1135 = vmatpush1.msra.mxu0 0.0
    %1136 = vmatprep.subr.mxu0 0.0
    %1137 = vmatpush1.msra.mxu0 0.0
    %1138 = vmatprep.subr.mxu0 0.0
    %1139 = vmatpush1.msra.mxu0 0.0
    %1140 = vmatprep.subr.mxu0 0.0
    %1141 = vmatpush1.msra.mxu0 0.0
    %1142 = vmatprep.subr.mxu0 0.0
    %1143 = vmatpush1.msra.mxu0 0.0
    %1144 = vmatprep.subr.mxu0 0.0
    %1145 = vmatpush1.msra.mxu0 0.0
    %1146 = vmatprep.subr.mxu0 0.0
    %1147 = vmatpush1.msra.mxu0 0.0
    %1148 = vmatprep.subr.mxu0 0.0
    %1149 = vmatpush1.msra.mxu0 0.0
    %1150 = vmatprep.subr.mxu0 0.0
    %1151 = vmatpush1.msra.mxu0 0.0
    %1152 = vmatprep.subr.mxu0 0.0
    %1153 = vmatpush1.msra.mxu0 0.0
    %1154 = vmatprep.subr.mxu0 0.0
    %1155 = vmatpush1.msra.mxu0 0.0
    %1156 = vmatprep.subr.mxu0 0.0
    %1157 = vmatpush1.msra.mxu0 0.0
    %1158 = vmatprep.subr.mxu0 0.0
    %1159 = vmatpush1.msra.mxu0 0.0
    %1160 = vmatprep.subr.mxu0 0.0
    %1161 = vmatpush1.msra.mxu0 0.0
    %1162 = vmatprep.subr.mxu0 0.0
    %1163 = vmatpush1.msra.mxu0 0.0
    %1164 = vmatprep.subr.mxu0 0.0
    %1165 = vmatpush1.msra.mxu0 0.0
    %1166 = vmatprep.subr.mxu0 0.0
    %1167 = vmatpush1.msra.mxu0 0.0
    %1168 = vmatprep.subr.mxu0 0.0
    %1169 = vmatpush1.msra.mxu0 0.0
    %1170 = vmatprep.subr.mxu0 0.0
    %1171 = vmatpush1.msra.mxu0 0.0
    %1172 = vmatprep.subr.mxu0 0.0
    %1173 = vmatpush1.msra.mxu0 0.0
    %1174 = vmatprep.subr.mxu0 0.0
    %1175 = vmatpush1.msra.mxu0 0.0
    %1176 = vmatprep.subr.mxu0 0.0
    %1177 = vmatpush1.msra.mxu0 0.0
    %1178 = vmatprep.subr.mxu0 0.0
    %1179 = vmatpush1.msra.mxu0 0.0
    %1180 = vmatprep.subr.mxu0 0.0
    %1181 = vmatpush1.msra.mxu0 0.0
    %1182 = vmatprep.subr.mxu0 0.0
    %1183 = vmatpush1.msra.mxu0 0.0
    %1184 = vmatprep.subr.mxu0 0.0
    %1185 = vmatpush1.msra.mxu0 0.0
    %1186 = vmatprep.subr.mxu0 0.0
    %1187 = vmatpush1.msra.mxu0 0.0
    %1188 = vmatprep.subr.mxu0 0.0
    %1189 = vmatpush1.msra.mxu0 0.0
    %1190 = vmatprep.mubr.f32.mxu0 0.0
    %v1191 = vand.u32 %v683, 4294901760
    %1192 = vmatmul.mubr.f32.gmra.mrb[0].mxu0 %v1191
    %v1193 = vpop.f32.mrb[0].mxu0
    %v1194 = vadd.f32 %v1087, %v1193
    %v1195 = vpop.f32.mrb[0].mxu0
    %1196 = vmatprep.mubr.f32.mxu0 0.0
    %v1197 = vand.u32 %v686, 4294901760
    %1198 = vmatmul.mubr.f32.gmra.mrb[0].mxu0 %v1197
    %v1199 = vpop.f32.mrb[0].mxu0
    %v1200 = vadd.f32 %v1095, %v1199
    %v1201 = vpop.f32.mrb[0].mxu0
    %1202 = vmatprep.mubr.f32.mxu0 0.0
    %v1203 = vand.u32 %v689, 4294901760
    %1204 = vmatmul.mubr.f32.gmra.mrb[0].mxu0 %v1203
    %v1205 = vpop.f32.mrb[0].mxu0
    %v1206 = vadd.f32 %v1103, %v1205
    %v1207 = vpop.f32.mrb[0].mxu0
    %1208 = vmatprep.mubr.f32.mxu0 0.0
    %v1209 = vand.u32 %v692, 4294901760
    %1210 = vmatmul.mubr.f32.gmra.mrb[0].mxu0 %v1209
    %v1211 = vpop.f32.mrb[0].mxu0
    %v1212 = vadd.f32 %v1111, %v1211
    %v1213 = vpop.f32.mrb[0].mxu0
    %1214 = vdwg.mxu0
    %1215 = vmatprep.subr.mxu0 0.0
    %v1216 = vand.u32 %v649, 4294901760
    %1217 = vmatpush1.msra.mxu0 %v1216
    %1218 = vmatprep.subr.mxu0 0.0
    %v1219 = vand.u32 %v650, 4294901760
    %1220 = vmatpush1.msra.mxu0 %v1219
    %1221 = vmatprep.subr.mxu0 0.0
    %v1222 = vand.u32 %v651, 4294901760
    %1223 = vmatpush1.msra.mxu0 %v1222
    %1224 = vmatprep.subr.mxu0 0.0
    %v1225 = vand.u32 %v652, 4294901760
    %1226 = vmatpush1.msra.mxu0 %v1225
    %1227 = vmatprep.subr.mxu0 0.0
    %1228 = vmatpush1.msra.mxu0 0.0
    %1229 = vmatprep.subr.mxu0 0.0
    %1230 = vmatpush1.msra.mxu0 0.0
    %1231 = vmatprep.subr.mxu0 0.0
    %1232 = vmatpush1.msra.mxu0 0.0
    %1233 = vmatprep.subr.mxu0 0.0
    %1234 = vmatpush1.msra.mxu0 0.0
    %1235 = vmatprep.subr.mxu0 0.0
    %1236 = vmatpush1.msra.mxu0 0.0
    %1237 = vmatprep.subr.mxu0 0.0
    %1238 = vmatpush1.msra.mxu0 0.0
    %1239 = vmatprep.subr.mxu0 0.0
    %1240 = vmatpush1.msra.mxu0 0.0
    %1241 = vmatprep.subr.mxu0 0.0
    %1242 = vmatpush1.msra.mxu0 0.0
    %1243 = vmatprep.subr.mxu0 0.0
    %1244 = vmatpush1.msra.mxu0 0.0
    %1245 = vmatprep.subr.mxu0 0.0
    %1246 = vmatpush1.msra.mxu0 0.0
    %1247 = vmatprep.subr.mxu0 0.0
    %1248 = vmatpush1.msra.mxu0 0.0
    %1249 = vmatprep.subr.mxu0 0.0
    %1250 = vmatpush1.msra.mxu0 0.0
    %1251 = vmatprep.subr.mxu0 0.0
    %1252 = vmatpush1.msra.mxu0 0.0
    %1253 = vmatprep.subr.mxu0 0.0
    %1254 = vmatpush1.msra.mxu0 0.0
    %1255 = vmatprep.subr.mxu0 0.0
    %1256 = vmatpush1.msra.mxu0 0.0
    %1257 = vmatprep.subr.mxu0 0.0
    %1258 = vmatpush1.msra.mxu0 0.0
    %1259 = vmatprep.subr.mxu0 0.0
    %1260 = vmatpush1.msra.mxu0 0.0
    %1261 = vmatprep.subr.mxu0 0.0
    %1262 = vmatpush1.msra.mxu0 0.0
    %1263 = vmatprep.subr.mxu0 0.0
    %1264 = vmatpush1.msra.mxu0 0.0
    %1265 = vmatprep.subr.mxu0 0.0
    %1266 = vmatpush1.msra.mxu0 0.0
    %1267 = vmatprep.subr.mxu0 0.0
    %1268 = vmatpush1.msra.mxu0 0.0
    %1269 = vmatprep.subr.mxu0 0.0
    %1270 = vmatpush1.msra.mxu0 0.0
    %1271 = vmatprep.subr.mxu0 0.0
    %1272 = vmatpush1.msra.mxu0 0.0
    %1273 = vmatprep.subr.mxu0 0.0
    %1274 = vmatpush1.msra.mxu0 0.0
    %1275 = vmatprep.subr.mxu0 0.0
    %1276 = vmatpush1.msra.mxu0 0.0
    %1277 = vmatprep.subr.mxu0 0.0
    %1278 = vmatpush1.msra.mxu0 0.0
    %1279 = vmatprep.subr.mxu0 0.0
    %1280 = vmatpush1.msra.mxu0 0.0
    %1281 = vmatprep.subr.mxu0 0.0
    %1282 = vmatpush1.msra.mxu0 0.0
    %1283 = vmatprep.mubr.f32.mxu0 0.0
    %v1284 = vand.u32 %v683, 4294901760
    %1285 = vmatmul.mubr.f32.gmra.mrb[0].mxu0 %v1284
    %v1286 = vpop.f32.mrb[0].mxu0
    %v1287 = vadd.f32 %v1194, %v1286
    %v1288 = vpop.f32.mrb[0].mxu0
    %1289 = vmatprep.mubr.f32.mxu0 0.0
    %v1290 = vand.u32 %v686, 4294901760
    %1291 = vmatmul.mubr.f32.gmra.mrb[0].mxu0 %v1290
    %v1292 = vpop.f32.mrb[0].mxu0
    %v1293 = vadd.f32 %v1200, %v1292
    %v1294 = vpop.f32.mrb[0].mxu0
    %1295 = vmatprep.mubr.f32.mxu0 0.0
    %v1296 = vand.u32 %v689, 4294901760
    %1297 = vmatmul.mubr.f32.gmra.mrb[0].mxu0 %v1296
    %v1298 = vpop.f32.mrb[0].mxu0
    %v1299 = vadd.f32 %v1206, %v1298
    %v1300 = vpop.f32.mrb[0].mxu0
    %1301 = vmatprep.mubr.f32.mxu0 0.0
    %v1302 = vand.u32 %v692, 4294901760
    %1303 = vmatmul.mubr.f32.gmra.mrb[0].mxu0 %v1302
    %v1304 = vpop.f32.mrb[0].mxu0
    %v1305 = vadd.f32 %v1212, %v1304
    %v1306 = vpop.f32.mrb[0].mxu0
    %1307 = vdwg.mxu0
    %v1308 = vmax.f32 %v1287, 0.0
    %v1309 = vmax.f32 %v1293, 0.0
    %v1310 = vmax.f32 %v1299, 0.0
    %v1311 = vmax.f32 %v1305, 0.0
    %v1312 = vld [vmem:[%s5] sm:$0xff]
    %v1313 = vld [vmem:[%s5 + $0x8] sm:$0xff]
    %v1314 = vld [vmem:[%s5 + $0x10] sm:$0xff]
    %v1315 = vld [vmem:[%s5 + $0x18] sm:$0xff]
    %1317 = vset.pattern.permute.xlu0 0
    %1318 = vperm.xlu0 %1317, %v1312
    %v1319 = vpop.permute.xlu0 %1318
    %1322 = vset.pattern.permute.xlu0 0
    %1323 = vperm.xlu0 %1322, %v1313
    %v1324 = vpop.permute.xlu0 %1323
    %1327 = vset.pattern.permute.xlu0 0
    %1328 = vperm.xlu0 %1327, %v1314
    %v1329 = vpop.permute.xlu0 %1328
    %1332 = vset.pattern.permute.xlu0 0
    %1333 = vperm.xlu0 %1332, %v1315
    %v1334 = vpop.permute.xlu0 %1333
    %v1336 = vmul.f32 %v1308, %v1319
    %v1337 = vmul.f32 %v1309, %v1324
    %v1338 = vmul.f32 %v1310, %v1329
    %v1339 = vmul.f32 %v1311, %v1334
    %vm1340 = vcmask 64512
    %v1341 = vsel %vm1340, %v1336, 0.0
    %v1342 = vsel %vm1340, %v1337, 0.0
    %v1343 = vadd.f32 %v1341, %v1342
    %v1344 = vsel %vm1340, %v1338, 0.0
    %v1345 = vadd.f32 %v1343, %v1344
    %v1346 = vsel %vm1340, %v1339, 0.0
    %v1347 = vadd.f32 %v1345, %v1346
    %v1348 = vrot.slane %v1347, 4
    %v1349 = vadd.f32 %v1347, %v1348
    %v1350 = vrot.slane %v1349, 2
    %v1351 = vadd.f32 %v1349, %v1350
    %v1352 = vrot.slane %v1351, 1
    %v1353 = vadd.f32 %v1351, %v1352
    %v1354 = vld [vmem:[#allocation2] sm:$0x1]
    %1356 = vset.pattern.permute.xlu0 0
    %1357 = vperm.xlu0 %1356, %v1354
    %v1358 = vpop.permute.xlu0 %1357
    %v1360 = vlaneseq
    %v1361 = vshrl.u32 %v1360, 7
    %v1362 = vsub.s32 0, %v1361
    %v1363 = vrot.slane %v1358, %v1362
    %v1364 = vadd.f32 %v1353, %v1363
    %vm1365 = vcmask 57344
    %1366 = vst.msk [vmem:[#allocation3] sm:$0x1] %vm1365, %v1364
    // Predicated region
    $region30: #{tpu_custom_call.1} parent=1 // pred_check
      _
    $region31: #{tpu_custom_call.1} parent=1 // pred_check_branch
      %1368 = sbr.rel (0) target = $region33
    $region32: #{tpu_custom_call.1} parent=1 // pred_region
      %s1370 = ssub.s32 16, 16
      %1371 = vsyncadd [#allocation4], %s1370
      %s1373 = sshll.u32 [#allocation3], 4
      %s1374 = int_to_ptr.vmem [resolvable:$true] %s1373
      %1376 = dma.vmem_to_hbm [thread:$0]  %s1374, 16, %s7, [#allocation4]
    $region33: #{tpu_custom_call.1} parent=1 // pred_fallthru
      _
    // Predicated region
    $region34: #{tpu_custom_call.1} parent=1 // pred_check
      _
    $region35: #{tpu_custom_call.1} parent=1 // pred_check_branch
      %1378 = sbr.rel (0) target = $region37
    $region36: #{tpu_custom_call.1} parent=1 // pred_region
      %1379 = dma.done [#allocation4], 16
    $region37: #{tpu_custom_call.1} parent=1 // pred_fallthru
      _
    %1380 = vsyncpa [#allocation4], 1

</llo_original>
